<compile_context>
chip_gen: v7x
topology: tpu7x:2x2x1
jax: 0.10.0
libtpu: 0.0.40
codegen_flags: <defaults>
</compile_context>

<pallas_src>
import math
import functools

import jax
import jax.numpy as jnp
from jax.experimental import pallas as pl
from jax.experimental.pallas import tpu as pltpu


_SQRT_HALF = 0.7071067811865476  # 1/sqrt(2)
_NEG_INF = -1e30


# ----------------------- hardware-aware sizing helpers ----------------------

def _detect_vmem_limit():
    # ~3/4 of physical per-core VMEM: v5e/v6e (128 MiB) -> 96 MiB,
    # v7x (64 MiB) -> 48 MiB.  Conservative 48 MiB fallback if the query
    # is unavailable.
    try:
        cap = int(pltpu.get_tpu_info().vmem_capacity_bytes)
    except Exception:
        cap = 64 * 1024 * 1024
    return max(32 * 1024 * 1024, min((cap * 3) // 4, 96 * 1024 * 1024))


_VMEM_LIMIT = _detect_vmem_limit()


def _cparams(semantics):
    return pltpu.CompilerParams(dimension_semantics=semantics,
                                vmem_limit_bytes=_VMEM_LIMIT)


def _tile_m(m, row_elems):
    """Rows per activation tile: sized so streamed row tiles use ~1/4 of the
    scoped VMEM budget (rest: resident weights, double buffers, intermediates).
    `row_elems` ~ f32 elements touched per activation row inside the kernel."""
    budget_rows = (_VMEM_LIMIT // 4) // (4 * max(row_elems, 1))
    tm = max(8, min(1024, budget_rows))
    tm -= tm % 8
    return m if m <= tm else tm


def _hidden_chunk(hd):
    """MLP hidden-dim chunk (~512, multiple of 128, dividing Hd)."""
    if hd <= 512:
        return hd
    for c in (512, 384, 256, 128):
        if hd % c == 0:
            return c
    return hd


def _pick_attn_bb(b):
    """Samples per attention grid step: batch several to fill sublanes and
    amortize per-step overhead, but keep >= 2 grid steps when B >= 2 so both
    v7x TensorCores have work."""
    target = 8 if b >= 16 else max(1, b // 2)
    for bb in range(min(target, b), 0, -1):
        if b % bb == 0:
            return bb
    return 1


# Probe once whether pl.Buffered(1) (single-buffered, grid-invariant operands)
# is supported by the installed Pallas runtime; fall back to default buffering.
_single_buffer_ok = None


def _use_single_buffer():
    global _single_buffer_ok
    if _single_buffer_ok is None:
        try:
            if not hasattr(pl, "Buffered"):
                raise AttributeError("pl.Buffered missing")

            def _copy(x_ref, o_ref):
                o_ref[...] = x_ref[...] + 1.0

            fn = pl.pallas_call(
                _copy,
                out_shape=jax.ShapeDtypeStruct((8, 128), jnp.float32),
                grid=(2,),
                in_specs=[pl.BlockSpec((8, 128), lambda i: (0, 0),
                                       pipeline_mode=pl.Buffered(1))],
                out_specs=pl.BlockSpec((8, 128), lambda i: (0, 0)),
            )
            out = jax.block_until_ready(fn(jnp.zeros((8, 128), jnp.float32)))
            _single_buffer_ok = bool(jnp.all(out == 1.0))
        except Exception:
            _single_buffer_ok = False
    return _single_buffer_ok


def _const_spec(shape):
    """BlockSpec for a grid-invariant operand (weights / biases / LN params);
    single-buffered when supported to halve its VMEM footprint."""
    nd = len(shape)
    imap = lambda *_: (0,) * nd
    if _use_single_buffer():
        return pl.BlockSpec(shape, imap, pipeline_mode=pl.Buffered(1))
    return pl.BlockSpec(shape, imap)


# ----------------------------- Pallas kernels ------------------------------

def _linear_kernel(x_ref, w_ref, b_ref, o_ref):
    x = x_ref[...].astype(jnp.bfloat16)
    y = jnp.dot(x, w_ref[...], preferred_element_type=jnp.float32) + b_ref[...]
    o_ref[...] = y.astype(o_ref.dtype)


def _ln_linear_kernel(x_ref, g_ref, b_ref, w_ref, wb_ref, o_ref):
    x = x_ref[...]
    mu = jnp.mean(x, axis=-1, keepdims=True)
    var = jnp.mean((x - mu) ** 2, axis=-1, keepdims=True)
    xn = (x - mu) * jax.lax.rsqrt(var + 1e-5) * g_ref[...] + b_ref[...]
    y = (jnp.dot(xn.astype(jnp.bfloat16), w_ref[...],
                 preferred_element_type=jnp.float32) + wb_ref[...])
    o_ref[...] = y.astype(o_ref.dtype)


def _ln_mlp_res_kernel(x_ref, g_ref, b_ref, w1_ref, b1_ref, w2_ref, b2_ref,
                       o_ref, xn_ref):
    # Grid: (row tiles "parallel", hidden chunks "arbitrary").  The output
    # block is revisited across hidden chunks and used directly as the f32
    # accumulator; the LN result is cached once per row tile in bf16 scratch.
    @pl.when(pl.program_id(1) == 0)
    def _():
        x = x_ref[...]
        mu = jnp.mean(x, axis=-1, keepdims=True)
        var = jnp.mean((x - mu) ** 2, axis=-1, keepdims=True)
        xn = (x - mu) * jax.lax.rsqrt(var + 1e-5) * g_ref[...] + b_ref[...]
        xn_ref[...] = xn.astype(jnp.bfloat16)
        o_ref[...] = x + b2_ref[...]          # residual + fc2 bias

    h = (jnp.dot(xn_ref[...], w1_ref[...], preferred_element_type=jnp.float32)
         + b1_ref[...])
    # exact GELU (erf formulation), matching torch.nn.GELU()
    h = 0.5 * h * (1.0 + jax.lax.erf(h * _SQRT_HALF))
    o_ref[...] += jnp.dot(h.astype(jnp.bfloat16), w2_ref[...],
                          preferred_element_type=jnp.float32)


def _attn_block_kernel(qkv_ref, bias_ref, res_ref, wo_ref, bo_ref, o_ref,
                       ctx_ref, *, n_heads, scale):
    # qkv_ref : [Bb, S, 3E] bf16 (q | k | v, head-major within each)
    # bias_ref: [Bb, 1, S] f32 additive key-padding bias
    # res_ref : [Bb, S, E] f32 residual stream
    # ctx_ref : [Bb, S, E] bf16 VMEM scratch — concatenated per-head context
    bb, s_len, e_dim = res_ref.shape
    dh = e_dim // n_heads
    qkv = qkv_ref[...]
    bias = bias_ref[...]

    for h in range(n_heads):                          # static unroll (small)
        q = qkv[:, :, h * dh:(h + 1) * dh]
        k = qkv[:, :, e_dim + h * dh:e_dim + (h + 1) * dh]
        v = qkv[:, :, 2 * e_dim + h * dh:2 * e_dim + (h + 1) * dh]
        sc = jnp.einsum("bqd,bkd->bqk", q, k,
                        preferred_element_type=jnp.float32) * scale
        sc = sc + bias                                # broadcast over queries
        m = jnp.max(sc, axis=-1, keepdims=True)
        p = jnp.exp(sc - m)
        p = p * pl.reciprocal(jnp.sum(p, axis=-1, keepdims=True), approx=True)
        ctx_ref[:, :, h * dh:(h + 1) * dh] = jnp.einsum(
            "bqk,bkd->bqd", p.astype(jnp.bfloat16), v,
            preferred_element_type=jnp.float32).astype(jnp.bfloat16)

    # Single E-deep out-projection per sample (fills the MXU systolic depth),
    # fused with the out-proj bias and residual add.
    for b in range(bb):                               # static unroll (small)
        o_ref[b] = (res_ref[b] + bo_ref[...]
                    + jnp.dot(ctx_ref[b], wo_ref[...],
                              preferred_element_type=jnp.float32))


# ----------------------------- kernel wrappers ------------------------------

def linear(x, w, b, out_dtype=jnp.float32):
    """y = x @ w + b; rows tiled / pipelined, weights VMEM-resident."""
    M, K = x.shape
    N = w.shape[1]
    tm = _tile_m(M, K + N)
    return pl.pallas_call(
        _linear_kernel,
        out_shape=jax.ShapeDtypeStruct((M, N), out_dtype),
        grid=(pl.cdiv(M, tm),),
        in_specs=[
            pl.BlockSpec((tm, K), lambda i: (i, 0)),
            _const_spec((K, N)),
            _const_spec((1, N)),
        ],
        out_specs=pl.BlockSpec((tm, N), lambda i: (i, 0)),
        compiler_params=_cparams(("parallel",)),
    )(x, w, b.reshape(1, N))


def ln_linear(x, g, b, w, wb, out_dtype=jnp.float32):
    """Fused LayerNorm -> Linear (used for LN1+QKV and final norm+head)."""
    M, E = x.shape
    N = w.shape[1]
    tm = _tile_m(M, 2 * E + N)
    return pl.pallas_call(
        _ln_linear_kernel,
        out_shape=jax.ShapeDtypeStruct((M, N), out_dtype),
        grid=(pl.cdiv(M, tm),),
        in_specs=[
            pl.BlockSpec((tm, E), lambda i: (i, 0)),
            _const_spec((1, E)),
            _const_spec((1, E)),
            _const_spec((E, N)),
            _const_spec((1, N)),
        ],
        out_specs=pl.BlockSpec((tm, N), lambda i: (i, 0)),
        compiler_params=_cparams(("parallel",)),
    )(x, g.reshape(1, E), b.reshape(1, E), w, wb.reshape(1, N))


def ln_mlp_residual(x, g, b, w1, b1, w2, b2):
    """Fused LayerNorm -> Linear -> GELU -> Linear -> + residual, with the
    MLP hidden dimension chunked along a second ("arbitrary") grid axis."""
    M, E = x.shape
    Hd = w1.shape[1]
    tc = _hidden_chunk(Hd)
    tm = _tile_m(M, 3 * E + 2 * tc)
    return pl.pallas_call(
        _ln_mlp_res_kernel,
        out_shape=jax.ShapeDtypeStruct((M, E), jnp.float32),
        grid=(pl.cdiv(M, tm), Hd // tc),
        in_specs=[
            pl.BlockSpec((tm, E), lambda i, h: (i, 0)),
            _const_spec((1, E)),
            _const_spec((1, E)),
            pl.BlockSpec((E, tc), lambda i, h: (0, h)),
            pl.BlockSpec((1, tc), lambda i, h: (0, h)),
            pl.BlockSpec((tc, E), lambda i, h: (h, 0)),
            _const_spec((1, E)),
        ],
        out_specs=pl.BlockSpec((tm, E), lambda i, h: (i, 0)),
        scratch_shapes=[pltpu.VMEM((tm, E), jnp.bfloat16)],
        compiler_params=_cparams(("parallel", "arbitrary")),
    )(x, g.reshape(1, E), b.reshape(1, E), w1, b1.reshape(1, Hd),
      w2, b2.reshape(1, E))


def attention_block(qkv, key_bias, res, wo, bo, *, n_heads, scale):
    """All heads + softmax + out-proj + residual, several samples per step."""
    B, S, E3 = qkv.shape
    E = res.shape[-1]
    bb = _pick_attn_bb(B)
    return pl.pallas_call(
        functools.partial(_attn_block_kernel, n_heads=n_heads, scale=scale),
        out_shape=jax.ShapeDtypeStruct((B, S, E), jnp.float32),
        grid=(B // bb,),
        in_specs=[
            pl.BlockSpec((bb, S, E3), lambda i: (i, 0, 0)),
            pl.BlockSpec((bb, 1, S), lambda i: (i, 0, 0)),
            pl.BlockSpec((bb, S, E), lambda i: (i, 0, 0)),
            _const_spec((E, E)),
            _const_spec((1, E)),
        ],
        out_specs=pl.BlockSpec((bb, S, E), lambda i: (i, 0, 0)),
        scratch_shapes=[pltpu.VMEM((bb, S, E), jnp.bfloat16)],
        compiler_params=_cparams(("parallel",)),
    )(qkv, key_bias, res, wo, bo.reshape(1, E))


# ------------------------------- glue (JAX) --------------------------------

def pad_to_multiple(x, patch_size):
    pd_, ph_, pw_ = patch_size
    _, _, D, H, W = x.shape
    return jnp.pad(
        x, ((0, 0), (0, 0), (0, (-D) % pd_), (0, (-H) % ph_), (0, (-W) % pw_)))


def extract_patches(x, patch_size):
    # [B, C, D, H, W] -> [B, N, C*pd*ph*pw]  (d-major, h, w patch order — matches
    # Conv3d output .flatten(2).transpose(1, 2))
    pd_, ph_, pw_ = patch_size
    B, C, D, H, W = x.shape
    Dp, Hp, Wp = D // pd_, H // ph_, W // pw_
    xp = x.reshape(B, C, Dp, pd_, Hp, ph_, Wp, pw_)
    xp = xp.transpose(0, 2, 4, 6, 1, 3, 5, 7)
    return xp.reshape(B, Dp * Hp * Wp, C * pd_ * ph_ * pw_)


def masked_vit3d_forward(params, cfg, x, mask=None):
    patch_size = cfg["patch_size"]
    E = cfg["embed_dim"]
    n_heads = cfg["num_heads"]

    x = pad_to_multiple(x.astype(jnp.float32), patch_size)
    B = x.shape[0]
    patches = extract_patches(x, patch_size)               # [B, N, K]
    _, N, K = patches.shape
    S = N + 1

    # MaskedPatchEmbed3D.proj  (Conv3d with kernel=stride=patch == patch matmul)
    x_embed = linear(patches.reshape(B * N, K),
                     params["proj_w"], params["proj_b"]).reshape(B, N, E)

    # AvgPool3d(mask) + (>0.5) threshold + additive key-padding bias (plain
    # JAX — few KB of work, not worth a kernel launch).  The cls key is always
    # valid so every softmax row has >= 1 finite entry; masked keys never reach
    # the cls token at any layer — equivalent to the reference's ragged
    # per-sample gather for the cls-token output.
    if mask is not None:
        m = pad_to_multiple(mask.astype(jnp.float32), patch_size)
        m_patches = extract_patches(m, patch_size)          # [B, N, pd*ph*pw]
        keep = jnp.mean(m_patches, axis=-1) > 0.5
        patch_bias = jnp.where(keep, 0.0, _NEG_INF).astype(jnp.float32)
    else:
        patch_bias = jnp.zeros((B, N), jnp.float32)
    key_bias = jnp.pad(patch_bias, ((0, 0), (1, 0)))[:, None, :]   # [B, 1, S]

    cls = jnp.broadcast_to(params["cls_token"], (B, 1, E))
    tokens = jnp.concatenate([cls, x_embed], axis=1) + params["pos_embed"][:, :S]

    scale = 1.0 / math.sqrt(E // n_heads)
    for blk in params["blocks"]:
        # LN1 + QKV projection (fused, row-tiled); QKV emitted in bf16 — the
        # largest per-block intermediate, halves its HBM traffic.
        qkv = ln_linear(tokens.reshape(B * S, E), blk["ln1_g"], blk["ln1_b"],
                        blk["qkv_w"], blk["qkv_b"],
                        out_dtype=jnp.bfloat16).reshape(B, S, 3 * E)
        # attention (all heads) + out-proj + residual (fused, Bb samples/step)
        tokens = attention_block(qkv, key_bias, tokens,
                                 blk["out_w"], blk["out_b"],
                                 n_heads=n_heads, scale=scale)
        # LN2 + MLP (hidden-chunked) + residual (fused, row-tiled)
        tokens = ln_mlp_residual(tokens.reshape(B * S, E), blk["ln2_g"],
                                 blk["ln2_b"], blk["fc1_w"], blk["fc1_b"],
                                 blk["fc2_w"], blk["fc2_b"]).reshape(B, S, E)

    # final LayerNorm on cls rows + classification head (fused)
    return ln_linear(tokens[:, 0, :], params["norm_g"], params["norm_b"],
                     params["head_w"], params["head_b"])


# ---------------------------- parameter init --------------------------------

def init_params(key, cfg):
    C = cfg["in_channels"]
    pd_, ph_, pw_ = cfg["patch_size"]
    E = cfg["embed_dim"]
    depth = cfg["depth"]
    D, H, W = cfg["input_shape"]
    num_patches = math.ceil(D / pd_) * math.ceil(H / ph_) * math.ceil(W / pw_)
    hidden = int(E * 4.0)
    nc = cfg["num_classes"]

    keys = jax.random.split(key, 4 + depth)

    def rnd(k, shape, scale=0.02, dtype=jnp.bfloat16):
        # matmul weights stored in bf16 (halves DMA bytes; MXU is a bf16 engine)
        return (scale * jax.random.normal(k, shape)).astype(dtype)

    params = {
        "proj_w": rnd(keys[0], (C * pd_ * ph_ * pw_, E)),
        "proj_b": jnp.zeros((E,), jnp.float32),
        "cls_token": jnp.zeros((1, 1, E), jnp.float32),        # as in PyTorch init
        "pos_embed": rnd(keys[1], (1, num_patches + 1, E), dtype=jnp.float32),
        "norm_g": jnp.ones((E,), jnp.float32),
        "norm_b": jnp.zeros((E,), jnp.float32),
        "head_w": rnd(keys[2], (E, nc)),
        "head_b": jnp.zeros((nc,), jnp.float32),
        "blocks": [],
    }
    for d in range(depth):
        bkeys = jax.random.split(keys[4 + d], 4)
        params["blocks"].append({
            "ln1_g": jnp.ones((E,), jnp.float32),
            "ln1_b": jnp.zeros((E,), jnp.float32),
            "qkv_w": rnd(bkeys[0], (E, 3 * E)),
            "qkv_b": jnp.zeros((3 * E,), jnp.float32),
            "out_w": rnd(bkeys[1], (E, E)),
            "out_b": jnp.zeros((E,), jnp.float32),
            "ln2_g": jnp.ones((E,), jnp.float32),
            "ln2_b": jnp.zeros((E,), jnp.float32),
            "fc1_w": rnd(bkeys[2], (E, hidden)),
            "fc1_b": jnp.zeros((hidden,), jnp.float32),
            "fc2_w": rnd(bkeys[3], (hidden, E)),
            "fc2_b": jnp.zeros((E,), jnp.float32),
        })
    return params


# --------------------------------- main --------------------------------------

if __name__ == "__main__":
    cfg = dict(
        in_channels=1,
        input_shape=(16, 16, 16),
        patch_size=(8, 8, 8),     # -> 2*2*2 = 8 patches, seq len 9 with cls
        embed_dim=128,
        depth=2,
        num_heads=4,
        num_classes=2,
    )
    key = jax.random.PRNGKey(0)
    kp, kx, km = jax.random.split(key, 3)

    params = init_params(kp, cfg)

    B = 2
    x = jax.random.normal(kx, (B, cfg["in_channels"], *cfg["input_shape"]),
                          dtype=jnp.float32)
    mask = (jax.random.uniform(km, (B, 1, *cfg["input_shape"])) > 0.3).astype(
        jnp.float32)

    out = masked_vit3d_forward(params, cfg, x, mask)
    out = jax.block_until_ready(out)
    assert out.shape == (B, cfg["num_classes"]), out.shape
    assert bool(jnp.all(jnp.isfinite(out)))
    print("KERNEL_OK")
</pallas_src>

<mosaic_0001>
module attributes {stable_mosaic.version = 11 : i64} {
  func.func @_copy(%arg0: i32, %arg1: memref<8x128xf32, #tpu.memory_space<vmem>>, %arg2: memref<8x128xf32, #tpu.memory_space<vmem>>) attributes {dimension_semantics = [#tpu.dimension_semantics<arbitrary>], iteration_bounds = array<i64: 2>, scalar_prefetch = 0 : i64, scratch_operands = 0 : i64, tpu.core_type = #tpu.core_type<tc>, window_params = [{pipeline_mode = #tpu.pipeline_mode<synchronous>, transform_indices = @transform_0, window_bounds = array<i64: 8, 128>}, {pipeline_mode = #tpu.pipeline_mode<synchronous>, transform_indices = @transform_1, window_bounds = array<i64: 8, 128>}]} {
    %c0 = arith.constant 0 : index
    %c0_0 = arith.constant 0 : index
    %0 = vector.load %arg1[%c0, %c0_0] : memref<8x128xf32, #tpu.memory_space<vmem>>, vector<8x128xf32>
    %cst = arith.constant 1.000000e+00 : f32
    %1 = vector.broadcast %cst : f32 to vector<8x128xf32>
    %2 = arith.addf %0, %1 : vector<8x128xf32>
    %c0_1 = arith.constant 0 : index
    %c0_2 = arith.constant 0 : index
    %3 = vector.load %arg2[%c0_1, %c0_2] : memref<8x128xf32, #tpu.memory_space<vmem>>, vector<8x128xf32>
    tpu.vector_store %arg2[%c0_1, %c0_2], %2 {strides = array<i32>} : memref<8x128xf32, #tpu.memory_space<vmem>>, vector<8x128xf32>,
    return
  }
  func.func @transform_0(%arg0: i32) -> (i32, i32) {
    %c0_i32 = arith.constant 0 : i32
    %c0_i32_0 = arith.constant 0 : i32
    %c0_i32_1 = arith.constant 0 : i32
    return %c0_i32, %c0_i32_0 : i32, i32
  }
  func.func @transform_1(%arg0: i32) -> (i32, i32) {
    %c0_i32 = arith.constant 0 : i32
    %c0_i32_0 = arith.constant 0 : i32
    %c0_i32_1 = arith.constant 0 : i32
    return %c0_i32, %c0_i32_0 : i32, i32
  }
}

module attributes {stable_mosaic.version = 11 : i64} {
  func.func @_linear_kernel(%arg0: i32, %arg1: memref<16x512xf32, #tpu.memory_space<vmem>>, %arg2: memref<512x128xbf16, #tpu.memory_space<vmem>>, %arg3: memref<1x128xf32, #tpu.memory_space<vmem>>, %arg4: memref<16x128xf32, #tpu.memory_space<vmem>>) attributes {dimension_semantics = [#tpu.dimension_semantics<parallel>], iteration_bounds = array<i64: 1>, scalar_prefetch = 0 : i64, scratch_operands = 0 : i64, tpu.core_type = #tpu.core_type<tc>, window_params = [{transform_indices = @transform_0, window_bounds = array<i64: 16, 512>}, {pipeline_mode = #tpu.pipeline_mode<synchronous>, transform_indices = @transform_1, window_bounds = array<i64: 512, 128>}, {pipeline_mode = #tpu.pipeline_mode<synchronous>, transform_indices = @transform_2, window_bounds = array<i64: 1, 128>}, {transform_indices = @transform_3, window_bounds = array<i64: 16, 128>}]} {
    %c0 = arith.constant 0 : index
    %c0_0 = arith.constant 0 : index
    %0 = vector.load %arg1[%c0, %c0_0] : memref<16x512xf32, #tpu.memory_space<vmem>>, vector<16x512xf32>
    %1 = arith.truncf %0 : vector<16x512xf32> to vector<16x512xbf16>
    %c0_1 = arith.constant 0 : index
    %c0_2 = arith.constant 0 : index
    %2 = vector.load %arg2[%c0_1, %c0_2] : memref<512x128xbf16, #tpu.memory_space<vmem>>, vector<512x128xbf16>
    %cst = arith.constant dense<0.000000e+00> : vector<16x128xf32>
    %3 = tpu.matmul %1, %2, %cst {dimension_numbers = #tpu.dot_dimension_numbers<[1], [0], [0], [1], [0, 0, 1, 1], [], []>} : vector<16x512xbf16>, vector<512x128xbf16>, vector<16x128xf32> -> vector<16x128xf32>
    %c0_3 = arith.constant 0 : index
    %c0_4 = arith.constant 0 : index
    %4 = vector.load %arg3[%c0_3, %c0_4] : memref<1x128xf32, #tpu.memory_space<vmem>>, vector<1x128xf32>
    %5 = vector.broadcast %4 : vector<1x128xf32> to vector<16x128xf32>
    %6 = arith.addf %3, %5 : vector<16x128xf32>
    %c0_5 = arith.constant 0 : index
    %c0_6 = arith.constant 0 : index
    %7 = vector.load %arg4[%c0_5, %c0_6] : memref<16x128xf32, #tpu.memory_space<vmem>>, vector<16x128xf32>
    tpu.vector_store %arg4[%c0_5, %c0_6], %6 {strides = array<i32>} : memref<16x128xf32, #tpu.memory_space<vmem>>, vector<16x128xf32>,
    return
  }
  func.func @transform_0(%arg0: i32) -> (i32, i32) {
    %c0_i32 = arith.constant 0 : i32
    %c0_i32_0 = arith.constant 0 : i32
    return %arg0, %c0_i32 : i32, i32
  }
  func.func @transform_1(%arg0: i32) -> (i32, i32) {
    %c0_i32 = arith.constant 0 : i32
    %c0_i32_0 = arith.constant 0 : i32
    %c0_i32_1 = arith.constant 0 : i32
    return %c0_i32, %c0_i32_0 : i32, i32
  }
  func.func @transform_2(%arg0: i32) -> (i32, i32) {
    %c0_i32 = arith.constant 0 : i32
    %c0_i32_0 = arith.constant 0 : i32
    %c0_i32_1 = arith.constant 0 : i32
    return %c0_i32, %c0_i32_0 : i32, i32
  }
  func.func @transform_3(%arg0: i32) -> (i32, i32) {
    %c0_i32 = arith.constant 0 : i32
    %c0_i32_0 = arith.constant 0 : i32
    return %arg0, %c0_i32 : i32, i32
  }
}

</mosaic_0001>

<llo_original>
// kernel: tpu_custom_call.1
$region0: #{tpu_custom_call.1}
  #allocation0 [shape = 'u32[]', space=smem, size = 0x4, offset = 0x4, fixed_abs, tag = 'smem constant byte address 0x4 - core index']
  #allocation1 [shape = 'u32[144,128]{1,0:T(1,128)}', space=vmem, size = 0x12000, scoped, tag = 'internal scratch']
  %s0 = inlined_call_operand.hbm [shape: f32[8,128], index: 0, kind: input, shape index: {}]
  %s1 = inlined_call_operand.hbm [shape: f32[8,128], index: 1, kind: output, shape index: {}]
  %s2 = sld [smem:[#allocation0]]
  $region41: #{tpu_custom_call.1} parent=0
    _
  %s4 = ssub.s32 1, %s2
  %s5 = scalar_select 0, %s4, %s2
  $region1: #{tpu_custom_call.1} parent=0
    #allocation2 [shape = 'u8[4096]{0}', space=vmem, size = 0x1000, scoped, tag = 'input window, operand 0, single buffered']
    #allocation3 [shape = 's32[2]{0}', space=sflag, size = 0x8, scoped, tag = 'scoped memory for tpu_custom_call.1']
    #allocation4 [shape = 's32[2]{0}', space=sflag, size = 0x8, scoped, tag = 'scoped memory for tpu_custom_call.1']
    #allocation5 [shape = 'u8[4096]{0}', space=vmem, size = 0x1000, scoped, tag = 'output window, operand 0, single buffered']
    %6 = vsyncpa [#allocation3], 0
    %7 = vsyncpa [#allocation4], 0
    loop: start=0, step=1, limit=4
    $region2: #{tpu_custom_call.1} parent=1 // loop_pre_header
      _
    $region3: #{tpu_custom_call.1} parent=1 // loop_header
      %s9 = sphi 0, %s13
      %p10 = scmp.ge.s32.totalorder %s9, 4
      %s17 = sphi 0, %s17
      %s19 = sphi 0, %s17
      %s20 = sphi 0, %s19
      %s34 = sphi 0, %s20
      %s38 = sphi 0, %s38
      %s40 = sphi 0, %s38
      %s41 = sphi 0, %s40
      %s55 = sphi 0, %s41
    $region4: #{tpu_custom_call.1} parent=1 // loop_header_branch
      %12 = sbr.rel (%p10) target = $region8
    $region5: #{tpu_custom_call.1} parent=1 // loop_body
      %s14 = ssub.s32 %s9, 1
      %s15 = ssub.s32 %s9, 2
      %s16 = sadd.s32 %s9, 1
      %s18 = sadd.s32 %s17, 1
      %p21 = scmp.eq.s32.totalorder %s9, 1
      %p22 = scmp.ne.s32.totalorder %s17, %s19
      %p23 = scmp.eq.s32.totalorder %s9, 0
      %p24 = por %p22, %p23
      %p25 = scmp.ne.s32.totalorder %s17, %s19
      %p26 = scmp.eq.s32.totalorder %s14, 1
      %p27 = por %p25, %p26
      %p28 = scmp.ne.s32.totalorder %s19, %s20
      %p29 = scmp.eq.s32.totalorder %s14, 0
      %p30 = por %p28, %p29
      %p31 = scmp.ne.s32.totalorder %s19, %s20
      %p32 = scmp.eq.s32.totalorder %s15, 1
      %p33 = por %p31, %p32
      %p35 = scmp.ne.s32.totalorder %s20, %s34
      %p36 = scmp.eq.s32.totalorder %s15, 0
      %p37 = por %p35, %p36
      %s39 = sadd.s32 %s38, 1
      %p42 = scmp.eq.s32.totalorder %s9, 1
      %p43 = scmp.ne.s32.totalorder %s38, %s40
      %p44 = scmp.eq.s32.totalorder %s9, 0
      %p45 = por %p43, %p44
      %p46 = scmp.ne.s32.totalorder %s38, %s40
      %p47 = scmp.eq.s32.totalorder %s14, 1
      %p48 = por %p46, %p47
      %p49 = scmp.ne.s32.totalorder %s40, %s41
      %p50 = scmp.eq.s32.totalorder %s14, 0
      %p51 = por %p49, %p50
      %p52 = scmp.ne.s32.totalorder %s40, %s41
      %p53 = scmp.eq.s32.totalorder %s15, 1
      %p54 = por %p52, %p53
      %p56 = scmp.ne.s32.totalorder %s41, %s55
      %p57 = scmp.eq.s32.totalorder %s15, 0
      %p58 = por %p56, %p57
      %p59 = scmp.le.s32.totalorder 1, %s9
      %p60 = scmp.lt.s32.totalorder %s9, 3
      %p61 = pnand %p59, %p60
      %p62 = pneg %p61
      // Predicated region
      $region9: #{tpu_custom_call.1} parent=5 // pred_check
        _
      $region10: #{tpu_custom_call.1} parent=5 // pred_check_branch
        %64 = sbr.rel (%p61) target = $region12
      $region11: #{tpu_custom_call.1} parent=5 // pred_region
        %s65 = ssub.s32 %s9, 1
        // Predicated region
        $region13: #{tpu_custom_call.1} parent=11 // pred_check
          %p66 = pneg %p30
        $region14: #{tpu_custom_call.1} parent=11 // pred_check_branch
          %68 = sbr.rel (%p66) target = $region16
        $region15: #{tpu_custom_call.1} parent=11 // pred_region
          %s70 = ssub.s32 128, 128
          %71 = vsyncadd [#allocation3], %s70
          %s73 = sshll.u32 [#allocation2], 4
          %s74 = int_to_ptr.vmem [resolvable:$true] %s73
          %76 = dma.hbm_to_vmem [thread:$0]  %s0, 128, %s74, [#allocation3]
        $region16: #{tpu_custom_call.1} parent=11 // pred_fallthru
          _
      $region12: #{tpu_custom_call.1} parent=5 // pred_fallthru
        _
      %p77 = scmp.lt.s32.totalorder %s9, 2
      // Predicated region
      $region17: #{tpu_custom_call.1} parent=5 // pred_check
        %p78 = pneg %p77
      $region18: #{tpu_custom_call.1} parent=5 // pred_check_branch
        %80 = sbr.rel (%p78) target = $region20
      $region19: #{tpu_custom_call.1} parent=5 // pred_region
        _
      $region20: #{tpu_custom_call.1} parent=5 // pred_fallthru
        _
      %p81 = scmp.le.s32.totalorder 1, %s9
      %p82 = scmp.lt.s32.totalorder %s9, 3
      %p83 = pnand %p81, %p82
      %p84 = pneg %p83
      // Predicated region
      $region21: #{tpu_custom_call.1} parent=5 // pred_check
        _
      $region22: #{tpu_custom_call.1} parent=5 // pred_check_branch
        %86 = sbr.rel (%p83) target = $region24
      $region23: #{tpu_custom_call.1} parent=5 // pred_region
        %s87 = ssub.s32 %s9, 1
        // Predicated region
        $region25: #{tpu_custom_call.1} parent=23 // pred_check
          %p88 = pneg %p30
        $region26: #{tpu_custom_call.1} parent=23 // pred_check_branch
          %90 = sbr.rel (%p88) target = $region28
        $region27: #{tpu_custom_call.1} parent=23 // pred_region
          %91 = dma.done [#allocation3], 128
        $region28: #{tpu_custom_call.1} parent=23 // pred_fallthru
          _
        %p92 = pneg %p30
        %p93 = pneg %p27
        %p94 = pneg %p51
        %p95 = pneg %p48
        %v96 = vld [vmem:[#allocation2] sm:$0xff]
        %v97 = vadd.f32 %v96, 1.0
        %98 = vst [vmem:[#allocation5] sm:$0xff] %v97
        // Predicated region
        $region29: #{tpu_custom_call.1} parent=23 // pred_check
          %p99 = pneg %p48
        $region30: #{tpu_custom_call.1} parent=23 // pred_check_branch
          %101 = sbr.rel (%p99) target = $region32
        $region31: #{tpu_custom_call.1} parent=23 // pred_region
          %s103 = ssub.s32 128, 128
          %104 = vsyncadd [#allocation4], %s103
          %s106 = sshll.u32 [#allocation5], 4
          %s107 = int_to_ptr.vmem [resolvable:$true] %s106
          %109 = dma.vmem_to_hbm [thread:$0]  %s107, 128, %s1, [#allocation4]
        $region32: #{tpu_custom_call.1} parent=23 // pred_fallthru
          _
        // Predicated region
        $region33: #{tpu_custom_call.1} parent=23 // pred_check
          %p110 = pneg %p48
        $region34: #{tpu_custom_call.1} parent=23 // pred_check_branch
          %112 = sbr.rel (%p110) target = $region36
        $region35: #{tpu_custom_call.1} parent=23 // pred_region
          %113 = dma.done [#allocation4], 128
        $region36: #{tpu_custom_call.1} parent=23 // pred_fallthru
          _
      $region24: #{tpu_custom_call.1} parent=5 // pred_fallthru
        _
      %p114 = scmp.le.s32.totalorder 2, %s9
      // Predicated region
      $region37: #{tpu_custom_call.1} parent=5 // pred_check
        %p115 = pneg %p114
      $region38: #{tpu_custom_call.1} parent=5 // pred_check_branch
        %117 = sbr.rel (%p115) target = $region40
      $region39: #{tpu_custom_call.1} parent=5 // pred_region
        %s118 = ssub.s32 %s9, 2
      $region40: #{tpu_custom_call.1} parent=5 // pred_fallthru
        _
    $region6: #{tpu_custom_call.1} parent=1 // loop_footer
      %s13 = sadd.s32 1, %s9
    $region7: #{tpu_custom_call.1} parent=1 // loop_footer_branch
      %8 = sbr.rel target = $region3
    $region8: #{tpu_custom_call.1} parent=1 // loop_exit
      _
    %119 = vsyncpa [#allocation3], 1
    %s120 = scalar_lea.sflag [#allocation3], 1
    %121 = vsyncpa %s120, 1
    %122 = vsyncpa [#allocation4], 1
    %s123 = scalar_lea.sflag [#allocation4], 1
    %124 = vsyncpa %s123, 1

// kernel: tpu_custom_call.1
$region0: #{tpu_custom_call.1}
  #allocation0 [shape = 'u32[]', space=smem, size = 0x4, offset = 0x4, fixed_abs, tag = 'smem constant byte address 0x4 - core index']
  #allocation1 [shape = 'u32[144,128]{1,0:T(1,128)}', space=vmem, size = 0x12000, scoped, tag = 'internal scratch']
  %s0 = inlined_call_operand.hbm [shape: f32[16,512], index: 0, kind: input, shape index: {}]
  %s1 = inlined_call_operand.hbm [shape: bf16[512,128], index: 1, kind: input, shape index: {}]
  %s2 = inlined_call_operand.vmem [shape: f32[1,128], index: 2, kind: input, shape index: {}]
  %s3 = inlined_call_operand.hbm [shape: f32[16,128], index: 3, kind: output, shape index: {}]
  %s4 = sld [smem:[#allocation0]]
  $region30: #{tpu_custom_call.1} parent=0
    _
  %s6 = ssub.s32 1, %s4
  %s7 = scalar_select 0, %s6, %s4
  $region1: #{tpu_custom_call.1} parent=0
    #allocation2 [shape = 'u8[32768]{0}', space=vmem, size = 0x8000, scoped, tag = 'input window, operand 0, single buffered']
    #allocation3 [shape = 's32[1]{0}', space=sflag, size = 0x4, scoped, tag = 'scoped memory for tpu_custom_call.1']
    #allocation4 [shape = 's32[1]{0}', space=sflag, size = 0x4, scoped, tag = 'scoped memory for tpu_custom_call.1']
    #allocation5 [shape = 'u8[131072]{0}', space=vmem, size = 0x20000, scoped, tag = 'input window, operand 1, single buffered']
    #allocation6 [shape = 's32[1]{0}', space=sflag, size = 0x4, scoped, tag = 'scoped memory for tpu_custom_call.1']
    #allocation7 [shape = 'u8[8192]{0}', space=vmem, size = 0x2000, scoped, tag = 'output window, operand 0, single buffered']
    %8 = vsyncpa [#allocation3], 0
    %9 = vsyncpa [#allocation6], 0
    %10 = vsyncpa [#allocation4], 0
    // Predicated region
    $region2: #{tpu_custom_call.1} parent=1 // pred_check
      _
    $region3: #{tpu_custom_call.1} parent=1 // pred_check_branch
      %12 = sbr.rel (0) target = $region5
    $region4: #{tpu_custom_call.1} parent=1 // pred_region
      %s14 = ssub.s32 1024, 1024
      %15 = vsyncadd [#allocation3], %s14
      %s16 = sshll.u32 [#allocation2], 4
      %s17 = int_to_ptr.vmem [resolvable:$true] %s16
      %22 = dma.hbm_to_vmem [thread:$0]  %s0, 1024, %s17, [#allocation3], 512, 512, 32
    $region5: #{tpu_custom_call.1} parent=1 // pred_fallthru
      _
    // Predicated region
    $region6: #{tpu_custom_call.1} parent=1 // pred_check
      _
    $region7: #{tpu_custom_call.1} parent=1 // pred_check_branch
      %24 = sbr.rel (0) target = $region9
    $region8: #{tpu_custom_call.1} parent=1 // pred_region
      %s26 = ssub.s32 4096, 4096
      %27 = vsyncadd [#allocation6], %s26
      %s28 = sshll.u32 [#allocation5], 4
      %s29 = int_to_ptr.vmem [resolvable:$true] %s28
      %34 = dma.hbm_to_vmem [thread:$0]  %s1, 4096, %s29, [#allocation6], 64, 64, 4
    $region9: #{tpu_custom_call.1} parent=1 // pred_fallthru
      _
    // Predicated region
    $region10: #{tpu_custom_call.1} parent=1 // pred_check
      _
    $region11: #{tpu_custom_call.1} parent=1 // pred_check_branch
      %36 = sbr.rel (0) target = $region13
    $region12: #{tpu_custom_call.1} parent=1 // pred_region
      _
    $region13: #{tpu_custom_call.1} parent=1 // pred_fallthru
      _
    // Predicated region
    $region14: #{tpu_custom_call.1} parent=1 // pred_check
      _
    $region15: #{tpu_custom_call.1} parent=1 // pred_check_branch
      %38 = sbr.rel (0) target = $region17
    $region16: #{tpu_custom_call.1} parent=1 // pred_region
      %39 = dma.done [#allocation3], 1024
    $region17: #{tpu_custom_call.1} parent=1 // pred_fallthru
      _
    // Predicated region
    $region18: #{tpu_custom_call.1} parent=1 // pred_check
      _
    $region19: #{tpu_custom_call.1} parent=1 // pred_check_branch
      %41 = sbr.rel (0) target = $region21
    $region20: #{tpu_custom_call.1} parent=1 // pred_region
      %42 = dma.done [#allocation6], 4096
    $region21: #{tpu_custom_call.1} parent=1 // pred_fallthru
      _
    %v44 = vld [vmem:[#allocation2] sm:$0xff]
    %v45 = vld [vmem:[#allocation2 + $0x8] sm:$0xff]
    %v46 = vld [vmem:[#allocation2 + $0x10] sm:$0xff]
    %v47 = vld [vmem:[#allocation2 + $0x18] sm:$0xff]
    %v48 = vld [vmem:[#allocation2 + $0x20] sm:$0xff]
    %v49 = vld [vmem:[#allocation2 + $0x28] sm:$0xff]
    %v50 = vld [vmem:[#allocation2 + $0x30] sm:$0xff]
    %v51 = vld [vmem:[#allocation2 + $0x38] sm:$0xff]
    %v52 = vpack.c.bf16 %v48, %v44
    %v53 = vpack.c.bf16 %v49, %v45
    %v54 = vpack.c.bf16 %v50, %v46
    %v55 = vpack.c.bf16 %v51, %v47
    %v56 = vld [vmem:[#allocation5] sm:$0xf]
    %v57 = vld [vmem:[#allocation5 + $0x4] sm:$0xf]
    %v58 = vld [vmem:[#allocation5 + $0x8] sm:$0xf]
    %v59 = vld [vmem:[#allocation5 + $0xc] sm:$0xf]
    %v60 = vld [vmem:[#allocation5 + $0x10] sm:$0xf]
    %v61 = vld [vmem:[#allocation5 + $0x14] sm:$0xf]
    %v62 = vld [vmem:[#allocation5 + $0x18] sm:$0xf]
    %v63 = vld [vmem:[#allocation5 + $0x1c] sm:$0xf]
    %v64 = vld [vmem:[#allocation5 + $0x20] sm:$0xf]
    %v65 = vld [vmem:[#allocation5 + $0x24] sm:$0xf]
    %v66 = vld [vmem:[#allocation5 + $0x28] sm:$0xf]
    %v67 = vld [vmem:[#allocation5 + $0x2c] sm:$0xf]
    %v68 = vld [vmem:[#allocation5 + $0x30] sm:$0xf]
    %v69 = vld [vmem:[#allocation5 + $0x34] sm:$0xf]
    %v70 = vld [vmem:[#allocation5 + $0x38] sm:$0xf]
    %v71 = vld [vmem:[#allocation5 + $0x3c] sm:$0xf]
    %v72 = vld [vmem:[#allocation5 + $0x40] sm:$0xf]
    %v73 = vld [vmem:[#allocation5 + $0x44] sm:$0xf]
    %v74 = vld [vmem:[#allocation5 + $0x48] sm:$0xf]
    %v75 = vld [vmem:[#allocation5 + $0x4c] sm:$0xf]
    %v76 = vld [vmem:[#allocation5 + $0x50] sm:$0xf]
    %v77 = vld [vmem:[#allocation5 + $0x54] sm:$0xf]
    %v78 = vld [vmem:[#allocation5 + $0x58] sm:$0xf]
    %v79 = vld [vmem:[#allocation5 + $0x5c] sm:$0xf]
    %v80 = vld [vmem:[#allocation5 + $0x60] sm:$0xf]
    %v81 = vld [vmem:[#allocation5 + $0x64] sm:$0xf]
    %v82 = vld [vmem:[#allocation5 + $0x68] sm:$0xf]
    %v83 = vld [vmem:[#allocation5 + $0x6c] sm:$0xf]
    %v84 = vld [vmem:[#allocation5 + $0x70] sm:$0xf]
    %v85 = vld [vmem:[#allocation5 + $0x74] sm:$0xf]
    %v86 = vld [vmem:[#allocation5 + $0x78] sm:$0xf]
    %v87 = vld [vmem:[#allocation5 + $0x7c] sm:$0xf]
    %v88 = vld [vmem:[#allocation5 + $0x80] sm:$0xf]
    %v89 = vld [vmem:[#allocation5 + $0x84] sm:$0xf]
    %v90 = vld [vmem:[#allocation5 + $0x88] sm:$0xf]
    %v91 = vld [vmem:[#allocation5 + $0x8c] sm:$0xf]
    %v92 = vld [vmem:[#allocation5 + $0x90] sm:$0xf]
    %v93 = vld [vmem:[#allocation5 + $0x94] sm:$0xf]
    %v94 = vld [vmem:[#allocation5 + $0x98] sm:$0xf]
    %v95 = vld [vmem:[#allocation5 + $0x9c] sm:$0xf]
    %v96 = vld [vmem:[#allocation5 + $0xa0] sm:$0xf]
    %v97 = vld [vmem:[#allocation5 + $0xa4] sm:$0xf]
    %v98 = vld [vmem:[#allocation5 + $0xa8] sm:$0xf]
    %v99 = vld [vmem:[#allocation5 + $0xac] sm:$0xf]
    %v100 = vld [vmem:[#allocation5 + $0xb0] sm:$0xf]
    %v101 = vld [vmem:[#allocation5 + $0xb4] sm:$0xf]
    %v102 = vld [vmem:[#allocation5 + $0xb8] sm:$0xf]
    %v103 = vld [vmem:[#allocation5 + $0xbc] sm:$0xf]
    %v104 = vld [vmem:[#allocation5 + $0xc0] sm:$0xf]
    %v105 = vld [vmem:[#allocation5 + $0xc4] sm:$0xf]
    %v106 = vld [vmem:[#allocation5 + $0xc8] sm:$0xf]
    %v107 = vld [vmem:[#allocation5 + $0xcc] sm:$0xf]
    %v108 = vld [vmem:[#allocation5 + $0xd0] sm:$0xf]
    %v109 = vld [vmem:[#allocation5 + $0xd4] sm:$0xf]
    %v110 = vld [vmem:[#allocation5 + $0xd8] sm:$0xf]
    %v111 = vld [vmem:[#allocation5 + $0xdc] sm:$0xf]
    %v112 = vld [vmem:[#allocation5 + $0xe0] sm:$0xf]
    %v113 = vld [vmem:[#allocation5 + $0xe4] sm:$0xf]
    %v114 = vld [vmem:[#allocation5 + $0xe8] sm:$0xf]
    %v115 = vld [vmem:[#allocation5 + $0xec] sm:$0xf]
    %v116 = vld [vmem:[#allocation5 + $0xf0] sm:$0xf]
    %v117 = vld [vmem:[#allocation5 + $0xf4] sm:$0xf]
    %v118 = vld [vmem:[#allocation5 + $0xf8] sm:$0xf]
    %v119 = vld [vmem:[#allocation5 + $0xfc] sm:$0xf]
    %v120 = vld [vmem:[%s2] sm:$0x1]
    %v122 = vlaneseq
    %v123 = vshrl.u32 %v122, 7
    %v124 = vsub.s32 0, %v123
    %v125 = vrot.slane %v120, %v124
    %v191 = vunpack.c.l.b16 %v56
    %v192 = vunpack.c.l.b16 %v57
    %v193 = vunpack.c.l.b16 %v58
    %v194 = vunpack.c.l.b16 %v59
    %v195 = vunpack.c.l.b16 %v60
    %v196 = vunpack.c.l.b16 %v61
    %v197 = vunpack.c.l.b16 %v62
    %v198 = vunpack.c.l.b16 %v63
    %v199 = vunpack.c.l.b16 %v64
    %v200 = vunpack.c.l.b16 %v65
    %v201 = vunpack.c.l.b16 %v66
    %v202 = vunpack.c.l.b16 %v67
    %v203 = vunpack.c.l.b16 %v68
    %v204 = vunpack.c.l.b16 %v69
    %v205 = vunpack.c.l.b16 %v70
    %v206 = vunpack.c.l.b16 %v71
    %v207 = vunpack.c.l.b16 %v72
    %v208 = vunpack.c.l.b16 %v73
    %v209 = vunpack.c.l.b16 %v74
    %v210 = vunpack.c.l.b16 %v75
    %v211 = vunpack.c.l.b16 %v76
    %v212 = vunpack.c.l.b16 %v77
    %v213 = vunpack.c.l.b16 %v78
    %v214 = vunpack.c.l.b16 %v79
    %v215 = vunpack.c.l.b16 %v80
    %v216 = vunpack.c.l.b16 %v81
    %v217 = vunpack.c.l.b16 %v82
    %v218 = vunpack.c.l.b16 %v83
    %v219 = vunpack.c.l.b16 %v84
    %v220 = vunpack.c.l.b16 %v85
    %v221 = vunpack.c.l.b16 %v86
    %v222 = vunpack.c.l.b16 %v87
    %v223 = vunpack.c.l.b16 %v88
    %v224 = vunpack.c.l.b16 %v89
    %v225 = vunpack.c.l.b16 %v90
    %v226 = vunpack.c.l.b16 %v91
    %v227 = vunpack.c.l.b16 %v92
    %v228 = vunpack.c.l.b16 %v93
    %v229 = vunpack.c.l.b16 %v94
    %v230 = vunpack.c.l.b16 %v95
    %v231 = vunpack.c.l.b16 %v96
    %v232 = vunpack.c.l.b16 %v97
    %v233 = vunpack.c.l.b16 %v98
    %v234 = vunpack.c.l.b16 %v99
    %v235 = vunpack.c.l.b16 %v100
    %v236 = vunpack.c.l.b16 %v101
    %v237 = vunpack.c.l.b16 %v102
    %v238 = vunpack.c.l.b16 %v103
    %v239 = vunpack.c.l.b16 %v104
    %v240 = vunpack.c.l.b16 %v105
    %v241 = vunpack.c.l.b16 %v106
    %v242 = vunpack.c.l.b16 %v107
    %v243 = vunpack.c.l.b16 %v108
    %v244 = vunpack.c.l.b16 %v109
    %v245 = vunpack.c.l.b16 %v110
    %v246 = vunpack.c.l.b16 %v111
    %v247 = vunpack.c.l.b16 %v112
    %v248 = vunpack.c.l.b16 %v113
    %v249 = vunpack.c.l.b16 %v114
    %v250 = vunpack.c.l.b16 %v115
    %v251 = vunpack.c.l.b16 %v116
    %v252 = vunpack.c.l.b16 %v117
    %v253 = vunpack.c.l.b16 %v118
    %v254 = vunpack.c.l.b16 %v119
    %v255 = vpack.c.b16 %v192, %v191
    %v256 = vpack.c.b16 %v194, %v193
    %v257 = vpack.c.b16 %v196, %v195
    %v258 = vpack.c.b16 %v198, %v197
    %v259 = vpack.c.b16 %v200, %v199
    %v260 = vpack.c.b16 %v202, %v201
    %v261 = vpack.c.b16 %v204, %v203
    %v262 = vpack.c.b16 %v206, %v205
    %v263 = vpack.c.b16 %v208, %v207
    %v264 = vpack.c.b16 %v210, %v209
    %v265 = vpack.c.b16 %v212, %v211
    %v266 = vpack.c.b16 %v214, %v213
    %v267 = vpack.c.b16 %v216, %v215
    %v268 = vpack.c.b16 %v218, %v217
    %v269 = vpack.c.b16 %v220, %v219
    %v270 = vpack.c.b16 %v222, %v221
    %v271 = vpack.c.b16 %v224, %v223
    %v272 = vpack.c.b16 %v226, %v225
    %v273 = vpack.c.b16 %v228, %v227
    %v274 = vpack.c.b16 %v230, %v229
    %v275 = vpack.c.b16 %v232, %v231
    %v276 = vpack.c.b16 %v234, %v233
    %v277 = vpack.c.b16 %v236, %v235
    %v278 = vpack.c.b16 %v238, %v237
    %v279 = vpack.c.b16 %v240, %v239
    %v280 = vpack.c.b16 %v242, %v241
    %v281 = vpack.c.b16 %v244, %v243
    %v282 = vpack.c.b16 %v246, %v245
    %v283 = vpack.c.b16 %v248, %v247
    %v284 = vpack.c.b16 %v250, %v249
    %v285 = vpack.c.b16 %v252, %v251
    %v286 = vpack.c.b16 %v254, %v253
    %319 = vmatprep.subr.bf16.mxu0 0
    %320 = vmatpush1.bf16.msra.mxu0 %v255
    %321 = vmatprep.subr.bf16.mxu0 0
    %322 = vmatpush1.bf16.msra.mxu0 %v256
    %323 = vmatprep.subr.bf16.mxu0 0
    %324 = vmatpush1.bf16.msra.mxu0 %v257
    %325 = vmatprep.subr.bf16.mxu0 0
    %326 = vmatpush1.bf16.msra.mxu0 %v258
    %327 = vmatprep.subr.bf16.mxu0 0
    %328 = vmatpush1.bf16.msra.mxu0 %v259
    %329 = vmatprep.subr.bf16.mxu0 0
    %330 = vmatpush1.bf16.msra.mxu0 %v260
    %331 = vmatprep.subr.bf16.mxu0 0
    %332 = vmatpush1.bf16.msra.mxu0 %v261
    %333 = vmatprep.subr.bf16.mxu0 0
    %334 = vmatpush1.bf16.msra.mxu0 %v262
    %335 = vmatprep.subr.bf16.mxu0 0
    %336 = vmatpush1.bf16.msra.mxu0 %v263
    %337 = vmatprep.subr.bf16.mxu0 0
    %338 = vmatpush1.bf16.msra.mxu0 %v264
    %339 = vmatprep.subr.bf16.mxu0 0
    %340 = vmatpush1.bf16.msra.mxu0 %v265
    %341 = vmatprep.subr.bf16.mxu0 0
    %342 = vmatpush1.bf16.msra.mxu0 %v266
    %343 = vmatprep.subr.bf16.mxu0 0
    %344 = vmatpush1.bf16.msra.mxu0 %v267
    %345 = vmatprep.subr.bf16.mxu0 0
    %346 = vmatpush1.bf16.msra.mxu0 %v268
    %347 = vmatprep.subr.bf16.mxu0 0
    %348 = vmatpush1.bf16.msra.mxu0 %v269
    %349 = vmatprep.subr.bf16.mxu0 0
    %350 = vmatpush1.bf16.msra.mxu0 %v270
    %351 = vmatprep.mubr.bf16.mxu0 %v53
    %352 = vmatmul.mubr.bf16.gmra.mrb[0].mxu0 %v52
    %v353 = vpop.f32.mrb[0].mxu0
    %v354 = vadd.f32 %v125, %v353
    %v355 = vpop.f32.mrb[0].mxu0
    %v356 = vpop.f32.mrb[0].mxu0
    %v357 = vadd.f32 %v125, %v356
    %v358 = vpop.f32.mrb[0].mxu0
    %359 = vdwg.mxu0
    %360 = vmatprep.subr.bf16.mxu0 0
    %361 = vmatpush1.bf16.msra.mxu0 %v271
    %362 = vmatprep.subr.bf16.mxu0 0
    %363 = vmatpush1.bf16.msra.mxu0 %v272
    %364 = vmatprep.subr.bf16.mxu0 0
    %365 = vmatpush1.bf16.msra.mxu0 %v273
    %366 = vmatprep.subr.bf16.mxu0 0
    %367 = vmatpush1.bf16.msra.mxu0 %v274
    %368 = vmatprep.subr.bf16.mxu0 0
    %369 = vmatpush1.bf16.msra.mxu0 %v275
    %370 = vmatprep.subr.bf16.mxu0 0
    %371 = vmatpush1.bf16.msra.mxu0 %v276
    %372 = vmatprep.subr.bf16.mxu0 0
    %373 = vmatpush1.bf16.msra.mxu0 %v277
    %374 = vmatprep.subr.bf16.mxu0 0
    %375 = vmatpush1.bf16.msra.mxu0 %v278
    %376 = vmatprep.subr.bf16.mxu0 0
    %377 = vmatpush1.bf16.msra.mxu0 %v279
    %378 = vmatprep.subr.bf16.mxu0 0
    %379 = vmatpush1.bf16.msra.mxu0 %v280
    %380 = vmatprep.subr.bf16.mxu0 0
    %381 = vmatpush1.bf16.msra.mxu0 %v281
    %382 = vmatprep.subr.bf16.mxu0 0
    %383 = vmatpush1.bf16.msra.mxu0 %v282
    %384 = vmatprep.subr.bf16.mxu0 0
    %385 = vmatpush1.bf16.msra.mxu0 %v283
    %386 = vmatprep.subr.bf16.mxu0 0
    %387 = vmatpush1.bf16.msra.mxu0 %v284
    %388 = vmatprep.subr.bf16.mxu0 0
    %389 = vmatpush1.bf16.msra.mxu0 %v285
    %390 = vmatprep.subr.bf16.mxu0 0
    %391 = vmatpush1.bf16.msra.mxu0 %v286
    %392 = vmatprep.mubr.bf16.mxu0 %v55
    %393 = vmatmul.mubr.bf16.gmra.mrb[0].mxu0 %v54
    %v394 = vpop.f32.mrb[0].mxu0
    %v395 = vadd.f32 %v354, %v394
    %v396 = vpop.f32.mrb[0].mxu0
    %v397 = vpop.f32.mrb[0].mxu0
    %v398 = vadd.f32 %v357, %v397
    %v399 = vpop.f32.mrb[0].mxu0
    %400 = vdwg.mxu0
    %401 = vst [vmem:[#allocation7] sm:$0xff] %v395
    %402 = vst [vmem:[#allocation7 + $0x8] sm:$0xff] %v398
    // Predicated region
    $region22: #{tpu_custom_call.1} parent=1 // pred_check
      _
    $region23: #{tpu_custom_call.1} parent=1 // pred_check_branch
      %404 = sbr.rel (0) target = $region25
    $region24: #{tpu_custom_call.1} parent=1 // pred_region
      %s406 = ssub.s32 256, 256
      %407 = vsyncadd [#allocation4], %s406
      %s408 = sshll.u32 [#allocation7], 4
      %s409 = int_to_ptr.vmem [resolvable:$true] %s408
      %414 = dma.vmem_to_hbm [thread:$0]  %s409, 256, %s3, [#allocation4], 128, 128, 8
    $region25: #{tpu_custom_call.1} parent=1 // pred_fallthru
      _
    // Predicated region
    $region26: #{tpu_custom_call.1} parent=1 // pred_check
      _
    $region27: #{tpu_custom_call.1} parent=1 // pred_check_branch
      %416 = sbr.rel (0) target = $region29
    $region28: #{tpu_custom_call.1} parent=1 // pred_region
      %417 = dma.done [#allocation4], 256
    $region29: #{tpu_custom_call.1} parent=1 // pred_fallthru
      _
    %418 = vsyncpa [#allocation3], 1
    %419 = vsyncpa [#allocation6], 1
    %420 = vsyncpa [#allocation4], 1

</llo_original>
